<compile_context>
chip_gen: v5e
topology: v5e:2x2
jax: 0.10.0
libtpu: 0.0.40
codegen_flags: <defaults>
</compile_context>

<pallas_src>
import functools

import jax
import jax.numpy as jnp
from jax.experimental import pallas as pl
from jax.experimental.pallas import tpu as pltpu


def _round_up(v: int, m: int) -> int:
    return ((v + m - 1) // m) * m


def _diffpool_layer_kernel(
    a_ref,      # [Bt, N, N]   bf16  GCN-normalized adjacency
    x_ref,      # [Bt, N, Cin] bf16  node features
    wcat_ref,   # [Cin, W]     bf16  [w_embed | w_assign | 0...0]  (col W-1 all zero)
    wla_ref,    # [W, K]       bf16  lin_assign weight in rows H:H+A, its bias in row W-1
    wl_ref,     # [W, W]       bf16  lin weight in rows :H / cols :Cin, zero elsewhere
    vec_ref,    # [8, W]       f32   row0=b_cat (1.0 at col W-1), row1=b_lin,
                #                    row2=ln_gamma, row3=ln_beta (all zero-padded)
    o_ref,      # [Bt, K, W]   f32   padded output; real data in cols :Cin
    *,
    c_in: int,
    bt: int,
    n: int,
    k: int,
):
    bf16 = jnp.bfloat16
    f32 = jnp.float32

    # --- per-graph A @ X (bf16 in, f32 acc), stacked into one [Bt*N, Cin] block ---
    ax_parts = [
        jnp.dot(a_ref[g], x_ref[g], preferred_element_type=f32) for g in range(bt)
    ]
    ax = jnp.concatenate(ax_parts, axis=0).astype(bf16)            # [Bt*N, Cin]

    # --- both GCN convs fused into ONE weight matmul shared across graphs ---
    az = jnp.dot(ax, wcat_ref[...], preferred_element_type=f32)    # [Bt*N, W]
    zr = jnp.maximum(az + vec_ref[0:1, :], 0.0)
    # zr cols: [:H]=relu(embed conv), [H:H+A]=relu(assign conv), [W-1]=1.0 (bias carrier)
    zr_bf = zr.astype(bf16)

    # --- lin_assign (bias folded via the ones-column) + exact softmax over clusters ---
    logits = jnp.dot(zr_bf, wla_ref[...], preferred_element_type=f32)   # [Bt*N, K]
    m = jnp.max(logits, axis=-1, keepdims=True)
    e = jnp.exp(logits - m)
    s = (e / jnp.sum(e, axis=-1, keepdims=True)).astype(bf16)           # rows sum to 1

    # --- per-graph pooling S^T @ ZR (leading-axis contraction, no S^T materialized) ---
    pool_parts = []
    for g in range(bt):
        sg = s[g * n:(g + 1) * n, :]                                    # [N, K]
        zg = zr_bf[g * n:(g + 1) * n, :]                                # [N, W]
        pool_parts.append(jax.lax.dot_general(
            sg, zg, dimension_numbers=(((0,), (0,)), ((), ())),
            preferred_element_type=f32))                                # [K, W]
    x_pool = jnp.concatenate(pool_parts, axis=0).astype(bf16)           # [Bt*K, W]

    # --- output Linear (zero-padded weight kills assign / bias-carrier columns) ---
    y = jnp.dot(x_pool, wl_ref[...], preferred_element_type=f32) + vec_ref[1:2, :]

    # --- LayerNorm over the true c_in channels (padded cols of y are exactly 0) ---
    col = jax.lax.broadcasted_iota(jnp.int32, y.shape, 1)
    mask = col < c_in
    inv_c = 1.0 / float(c_in)
    mean = jnp.sum(y, axis=-1, keepdims=True) * inv_c
    diff = jnp.where(mask, y - mean, 0.0)
    var = jnp.sum(diff * diff, axis=-1, keepdims=True) * inv_c
    yn = diff * jax.lax.rsqrt(var + 1e-5)
    yn = yn * vec_ref[2:3, :] + vec_ref[3:4, :]

    # --- SiLU (EUP exp + approx reciprocal; padded cols stay exactly 0) ---
    out = yn * pl.reciprocal(1.0 + jnp.exp(-yn), approx=True)
    o_ref[...] = out.reshape(bt, k, -1)


def build_gcn_norm_adj(edge_index, num_nodes):
    """Dense GCN-normalized adjacency matching torch_geometric GCNConv defaults
    (add_self_loops=True, normalize=True, flow='source_to_target')."""
    src = edge_index[0]
    dst = edge_index[1]
    adj = jnp.zeros((num_nodes, num_nodes), jnp.float32)
    adj = adj.at[dst, src].add(1.0)                    # row = target, col = source
    adj = adj + jnp.eye(num_nodes, dtype=jnp.float32)  # self loops
    deg = jnp.sum(adj, axis=1)
    dinv = jnp.where(deg > 0, jax.lax.rsqrt(deg), 0.0)
    return adj * dinv[:, None] * dinv[None, :]


def _pick_graphs_per_step(b: int) -> int:
    """Largest Bt <= 8 dividing B that still leaves >= 2 grid steps (v7x megacore)."""
    best = 1
    for bt in range(1, min(b, 8) + 1):
        if b % bt == 0 and b // bt >= 2:
            best = bt
    return best


@jax.jit
def diffpool_layer_forward(a_norm, x, params):
    """a_norm: [B, N, N] dense GCN-normalized adjacency, x: [B, N, Cin].
    Preferably pass both already cast to bfloat16 (single upstream cast)."""
    b, n, c_in = x.shape
    h = params["w_embed"].shape[1]
    a_ch = params["w_assign"].shape[1]
    k = params["w_lin_assign"].shape[1]
    # One lane-dense padded width shared by the fused hidden dim (H + A + bias column)
    # and the output channel dim.
    w_pad = max(128, _round_up(max(h + a_ch + 1, c_in), 128))
    bt = _pick_graphs_per_step(b)

    f32, bf16 = jnp.float32, jnp.bfloat16

    # Inputs should already be bf16 (cast once upstream); only convert if needed.
    if a_norm.dtype != bf16:
        a_norm = a_norm.astype(bf16)
    if x.dtype != bf16:
        x = x.astype(bf16)

    # Fused conv weight [Cin, W]: [w_embed | w_assign | 0...]; last column stays zero.
    w_cat = jnp.zeros((c_in, w_pad), f32)
    w_cat = w_cat.at[:, :h].set(params["w_embed"])
    w_cat = w_cat.at[:, h:h + a_ch].set(params["w_assign"])

    # Fused conv bias + constant-1 column that carries the lin_assign bias forward.
    b_cat = jnp.zeros((w_pad,), f32)
    b_cat = b_cat.at[:h].set(params["b_embed"])
    b_cat = b_cat.at[h:h + a_ch].set(params["b_assign"])
    b_cat = b_cat.at[w_pad - 1].set(1.0)

    # lin_assign weight padded to [W, K]; its bias folded into row W-1.
    w_la = jnp.zeros((w_pad, k), f32)
    w_la = w_la.at[h:h + a_ch, :].set(params["w_lin_assign"])
    w_la = w_la.at[w_pad - 1, :].set(params["b_lin_assign"])

    # Output Linear weight padded to [W, W]; only rows :H / cols :Cin are live.
    w_l = jnp.zeros((w_pad, w_pad), f32)
    w_l = w_l.at[:h, :c_in].set(params["w_lin"])

    # All per-channel vectors collapsed into a single [8, W] operand.
    vecs = jnp.zeros((8, w_pad), f32)
    vecs = vecs.at[0, :].set(b_cat)
    vecs = vecs.at[1, :c_in].set(params["b_lin"])
    vecs = vecs.at[2, :c_in].set(params["ln_gamma"])
    vecs = vecs.at[3, :c_in].set(params["ln_beta"])

    kernel = functools.partial(_diffpool_layer_kernel, c_in=c_in, bt=bt, n=n, k=k)

    # TODO(synk): for very large N (>~2K nodes) tile A over row blocks
    # (BlockSpec (bt, tn, N) + extra grid axis) and set vmem_limit_bytes; a full
    # [N, N] bf16 block double-buffered overruns v7x's 64 MiB VMEM ~2x sooner than
    # v5e/v6e's 128 MiB.
    out = pl.pallas_call(
        kernel,
        out_shape=jax.ShapeDtypeStruct((b, k, w_pad), jnp.float32),
        grid_spec=pltpu.PrefetchScalarGridSpec(
            num_scalar_prefetch=0,
            grid=(b // bt,),
            in_specs=[
                pl.BlockSpec((bt, n, n), lambda g: (g, 0, 0)),       # a_norm (Bt graphs)
                pl.BlockSpec((bt, n, c_in), lambda g: (g, 0, 0)),    # x      (Bt graphs)
                pl.BlockSpec((c_in, w_pad), lambda g: (0, 0)),       # fused conv weight
                pl.BlockSpec((w_pad, k), lambda g: (0, 0)),          # lin_assign (+bias row)
                pl.BlockSpec((w_pad, w_pad), lambda g: (0, 0)),      # output Linear weight
                pl.BlockSpec((8, w_pad), lambda g: (0, 0)),          # bias / gamma / beta stack
            ],
            out_specs=pl.BlockSpec((bt, k, w_pad), lambda g: (g, 0, 0)),
        ),
        compiler_params=pltpu.CompilerParams(
            dimension_semantics=("parallel",)),
    )(
        a_norm,
        x,
        w_cat.astype(bf16),
        w_la.astype(bf16),
        w_l.astype(bf16),
        vecs,
    )
    return out[:, :, :c_in]


def diffpool_layer_reference(a_norm, x, params):
    """Pure-JAX f32 reference of the PyTorch forward (adj_pool=False)."""
    z = jax.nn.relu(a_norm @ (x @ params["w_embed"]) + params["b_embed"])
    sf = jax.nn.relu(a_norm @ (x @ params["w_assign"]) + params["b_assign"])
    logits = sf @ params["w_lin_assign"] + params["b_lin_assign"]
    s = jax.nn.softmax(logits, axis=-1)
    x_pool = jnp.einsum("bnk,bnh->bkh", s, z)
    y = x_pool @ params["w_lin"] + params["b_lin"]
    mean = jnp.mean(y, axis=-1, keepdims=True)
    var = jnp.mean((y - mean) ** 2, axis=-1, keepdims=True)
    yn = (y - mean) * jax.lax.rsqrt(var + 1e-5) * params["ln_gamma"] + params["ln_beta"]
    return yn * jax.nn.sigmoid(yn)


def init_params(key, in_channels, hidden_channels, assign_channels, num_clusters):
    ks = jax.random.split(key, 8)

    def u(k, shape, fan_in):
        bound = 1.0 / jnp.sqrt(fan_in)
        return jax.random.uniform(k, shape, jnp.float32, -bound, bound)

    return {
        # GCNConv weights stored [in, out]
        "w_embed": u(ks[0], (in_channels, hidden_channels), in_channels),
        "b_embed": 0.1 * u(ks[6], (hidden_channels,), hidden_channels),
        "w_assign": u(ks[1], (in_channels, assign_channels), in_channels),
        "b_assign": 0.1 * u(ks[7], (assign_channels,), assign_channels),
        # nn.Linear(assign_channels, num_clusters), stored transposed [in, out]
        "w_lin_assign": u(ks[2], (assign_channels, num_clusters), assign_channels),
        "b_lin_assign": u(ks[3], (num_clusters,), assign_channels),
        # nn.Linear(hidden_channels, in_channels), stored transposed [in, out]
        "w_lin": u(ks[4], (hidden_channels, in_channels), hidden_channels),
        "b_lin": u(ks[5], (in_channels,), hidden_channels),
        # LayerNorm(in_channels)
        "ln_gamma": jnp.ones((in_channels,), jnp.float32),
        "ln_beta": jnp.zeros((in_channels,), jnp.float32),
    }


if __name__ == "__main__":
    # 2 graphs x 64 nodes, 16 input features, hidden=32, assign=16, 8 clusters, 256 edges each.
    B, N, C_IN, HIDDEN, ASSIGN, K_CLUSTERS, E = 2, 64, 16, 32, 16, 8, 256

    key = jax.random.PRNGKey(0)
    k_x, k_e, k_p = jax.random.split(key, 3)

    x = jax.random.normal(k_x, (B, N, C_IN), jnp.float32)

    edge_keys = jax.random.split(k_e, 2 * B)
    a_list = []
    for g in range(B):
        src = jax.random.randint(edge_keys[2 * g], (E,), 0, N)
        dst = jax.random.randint(edge_keys[2 * g + 1], (E,), 0, N)
        edge_index = jnp.stack([src, dst], axis=0).astype(jnp.int32)
        a_list.append(build_gcn_norm_adj(edge_index, N))
    a_norm = jnp.stack(a_list, axis=0)   # glue: dense normalized adjacency per graph

    params = init_params(k_p, C_IN, HIDDEN, ASSIGN, K_CLUSTERS)

    # bf16 emitted once upstream (not re-converted on every forward inside jit).
    a_bf16 = a_norm.astype(jnp.bfloat16)
    x_bf16 = x.astype(jnp.bfloat16)

    out = diffpool_layer_forward(a_bf16, x_bf16, params)
    jax.block_until_ready(out)

    assert out.shape == (B, K_CLUSTERS, C_IN)
    assert jnp.all(jnp.isfinite(out))

    # f32 reference check (kernel uses bf16 matmul inputs + approx SiLU reciprocal).
    ref = diffpool_layer_reference(a_norm, x, params)
    max_err = float(jnp.max(jnp.abs(out - ref)))
    assert max_err < 0.25, f"kernel vs f32 reference max abs err {max_err}"

    print("KERNEL_OK")
</pallas_src>

<mosaic_0001>
module attributes {stable_mosaic.version = 11 : i64} {
  func.func @_diffpool_layer_kernel(%arg0: i32, %arg1: memref<1x64x64xbf16, #tpu.memory_space<vmem>>, %arg2: memref<1x64x16xbf16, #tpu.memory_space<vmem>>, %arg3: memref<16x128xbf16, #tpu.memory_space<vmem>>, %arg4: memref<128x8xbf16, #tpu.memory_space<vmem>>, %arg5: memref<128x128xbf16, #tpu.memory_space<vmem>>, %arg6: memref<8x128xf32, #tpu.memory_space<vmem>>, %arg7: memref<1x8x128xf32, #tpu.memory_space<vmem>>) attributes {dimension_semantics = [#tpu.dimension_semantics<parallel>], iteration_bounds = array<i64: 2>, scalar_prefetch = 0 : i64, scratch_operands = 0 : i64, tpu.core_type = #tpu.core_type<tc>, window_params = [{transform_indices = @transform_0, window_bounds = array<i64: 1, 64, 64>}, {transform_indices = @transform_1, window_bounds = array<i64: 1, 64, 16>}, {pipeline_mode = #tpu.pipeline_mode<synchronous>, transform_indices = @transform_2, window_bounds = array<i64: 16, 128>}, {pipeline_mode = #tpu.pipeline_mode<synchronous>, transform_indices = @transform_3, window_bounds = array<i64: 128, 8>}, {pipeline_mode = #tpu.pipeline_mode<synchronous>, transform_indices = @transform_4, window_bounds = array<i64: 128, 128>}, {pipeline_mode = #tpu.pipeline_mode<synchronous>, transform_indices = @transform_5, window_bounds = array<i64: 8, 128>}, {transform_indices = @transform_6, window_bounds = array<i64: 1, 8, 128>}]} {
    %c0 = arith.constant 0 : index
    %c0_0 = arith.constant 0 : index
    %c0_1 = arith.constant 0 : index
    %0 = vector.load %arg1[%c0, %c0_0, %c0_1] : memref<1x64x64xbf16, #tpu.memory_space<vmem>>, vector<1x64x64xbf16>
    %1 = vector.shape_cast %0 : vector<1x64x64xbf16> to vector<64x64xbf16>
    %c0_2 = arith.constant 0 : index
    %c0_3 = arith.constant 0 : index
    %c0_4 = arith.constant 0 : index
    %2 = vector.load %arg2[%c0_2, %c0_3, %c0_4] : memref<1x64x16xbf16, #tpu.memory_space<vmem>>, vector<1x64x16xbf16>
    %3 = vector.shape_cast %2 : vector<1x64x16xbf16> to vector<64x16xbf16>
    %cst = arith.constant dense<0.000000e+00> : vector<64x16xf32>
    %4 = tpu.matmul %1, %3, %cst {dimension_numbers = #tpu.dot_dimension_numbers<[1], [0], [0], [1], [0, 0, 1, 1], [], []>} : vector<64x64xbf16>, vector<64x16xbf16>, vector<64x16xf32> -> vector<64x16xf32>
    %5 = arith.truncf %4 : vector<64x16xf32> to vector<64x16xbf16>
    %c0_5 = arith.constant 0 : index
    %c0_6 = arith.constant 0 : index
    %6 = vector.load %arg3[%c0_5, %c0_6] : memref<16x128xbf16, #tpu.memory_space<vmem>>, vector<16x128xbf16>
    %cst_7 = arith.constant dense<0.000000e+00> : vector<64x128xf32>
    %7 = tpu.matmul %5, %6, %cst_7 {dimension_numbers = #tpu.dot_dimension_numbers<[1], [0], [0], [1], [0, 0, 1, 1], [], []>} : vector<64x16xbf16>, vector<16x128xbf16>, vector<64x128xf32> -> vector<64x128xf32>
    %c0_8 = arith.constant 0 : index
    %c0_9 = arith.constant 0 : index
    %8 = vector.load %arg6[%c0_8, %c0_9] : memref<8x128xf32, #tpu.memory_space<vmem>>, vector<1x128xf32>
    %9 = vector.broadcast %8 : vector<1x128xf32> to vector<64x128xf32>
    %10 = arith.addf %7, %9 : vector<64x128xf32>
    %cst_10 = arith.constant 0.000000e+00 : f32
    %11 = vector.broadcast %cst_10 : f32 to vector<64x128xf32>
    %12 = arith.maximumf %10, %11 : vector<64x128xf32>
    %13 = arith.truncf %12 : vector<64x128xf32> to vector<64x128xbf16>
    %c0_11 = arith.constant 0 : index
    %c0_12 = arith.constant 0 : index
    %14 = vector.load %arg4[%c0_11, %c0_12] : memref<128x8xbf16, #tpu.memory_space<vmem>>, vector<128x8xbf16>
    %cst_13 = arith.constant dense<0.000000e+00> : vector<64x8xf32>
    %15 = tpu.matmul %13, %14, %cst_13 {dimension_numbers = #tpu.dot_dimension_numbers<[1], [0], [0], [1], [0, 0, 1, 1], [], []>} : vector<64x128xbf16>, vector<128x8xbf16>, vector<64x8xf32> -> vector<64x8xf32>
    %cst_14 = arith.constant dense<0xFF800000> : vector<64xf32>
    %16 = vector.multi_reduction <maximumf>, %15, %cst_14 [1] : vector<64x8xf32> to vector<64xf32>
    %17 = vector.shape_cast %16 : vector<64xf32> to vector<64x1xf32>
    %18 = vector.broadcast %17 : vector<64x1xf32> to vector<64x8xf32>
    %19 = arith.subf %15, %18 : vector<64x8xf32>
    %20 = math.exp %19 : vector<64x8xf32>
    %cst_15 = arith.constant dense<0.000000e+00> : vector<64xf32>
    %21 = vector.multi_reduction <add>, %20, %cst_15 [1] : vector<64x8xf32> to vector<64xf32>
    %22 = vector.shape_cast %21 : vector<64xf32> to vector<64x1xf32>
    %23 = vector.broadcast %22 : vector<64x1xf32> to vector<64x8xf32>
    %24 = arith.divf %20, %23 : vector<64x8xf32>
    %25 = arith.truncf %24 : vector<64x8xf32> to vector<64x8xbf16>
    %cst_16 = arith.constant dense<0.000000e+00> : vector<8x128xf32>
    %26 = tpu.matmul %25, %13, %cst_16 {dimension_numbers = #tpu.dot_dimension_numbers<[0], [0], [1], [1], [0, 1, 1, 1], [], []>} : vector<64x8xbf16>, vector<64x128xbf16>, vector<8x128xf32> -> vector<8x128xf32>
    %27 = arith.truncf %26 : vector<8x128xf32> to vector<8x128xbf16>
    %c0_17 = arith.constant 0 : index
    %c0_18 = arith.constant 0 : index
    %28 = vector.load %arg5[%c0_17, %c0_18] : memref<128x128xbf16, #tpu.memory_space<vmem>>, vector<128x128xbf16>
    %cst_19 = arith.constant dense<0.000000e+00> : vector<8x128xf32>
    %29 = tpu.matmul %27, %28, %cst_19 {dimension_numbers = #tpu.dot_dimension_numbers<[1], [0], [0], [1], [0, 0, 1, 1], [], []>} : vector<8x128xbf16>, vector<128x128xbf16>, vector<8x128xf32> -> vector<8x128xf32>
    %c1 = arith.constant 1 : index
    %c0_20 = arith.constant 0 : index
    %30 = vector.load %arg6[%c1, %c0_20] : memref<8x128xf32, #tpu.memory_space<vmem>>, vector<1x128xf32>
    %31 = vector.broadcast %30 : vector<1x128xf32> to vector<8x128xf32>
    %32 = arith.addf %29, %31 : vector<8x128xf32>
    %33 = tpu.iota {dimensions = array<i32: 1>} : vector<8x128xi32>
    %c16_i32 = arith.constant 16 : i32
    %34 = vector.broadcast %c16_i32 : i32 to vector<8x128xi32>
    %35 = arith.cmpi slt, %33, %34 : vector<8x128xi32>
    %cst_21 = arith.constant dense<0.000000e+00> : vector<8xf32>
    %36 = vector.multi_reduction <add>, %32, %cst_21 [1] : vector<8x128xf32> to vector<8xf32>
    %37 = vector.shape_cast %36 : vector<8xf32> to vector<8x1xf32>
    %cst_22 = arith.constant 6.250000e-02 : f32
    %38 = vector.broadcast %cst_22 : f32 to vector<8x1xf32>
    %39 = arith.mulf %37, %38 : vector<8x1xf32>
    %40 = vector.broadcast %39 : vector<8x1xf32> to vector<8x128xf32>
    %41 = arith.subf %32, %40 : vector<8x128xf32>
    %cst_23 = arith.constant 0.000000e+00 : f32
    %42 = vector.broadcast %cst_23 : f32 to vector<8x128xf32>
    %43 = arith.select %35, %41, %42 : vector<8x128xi1>, vector<8x128xf32>
    %44 = arith.mulf %43, %43 : vector<8x128xf32>
    %cst_24 = arith.constant dense<0.000000e+00> : vector<8xf32>
    %45 = vector.multi_reduction <add>, %44, %cst_24 [1] : vector<8x128xf32> to vector<8xf32>
    %46 = vector.shape_cast %45 : vector<8xf32> to vector<8x1xf32>
    %cst_25 = arith.constant 6.250000e-02 : f32
    %47 = vector.broadcast %cst_25 : f32 to vector<8x1xf32>
    %48 = arith.mulf %46, %47 : vector<8x1xf32>
    %cst_26 = arith.constant 9.99999974E-6 : f32
    %49 = vector.broadcast %cst_26 : f32 to vector<8x1xf32>
    %50 = arith.addf %48, %49 : vector<8x1xf32>
    %51 = math.rsqrt %50 : vector<8x1xf32>
    %52 = vector.broadcast %51 : vector<8x1xf32> to vector<8x128xf32>
    %53 = arith.mulf %43, %52 : vector<8x128xf32>
    %c2 = arith.constant 2 : index
    %c0_27 = arith.constant 0 : index
    %54 = vector.load %arg6[%c2, %c0_27] : memref<8x128xf32, #tpu.memory_space<vmem>>, vector<1x128xf32>
    %55 = vector.broadcast %54 : vector<1x128xf32> to vector<8x128xf32>
    %56 = arith.mulf %53, %55 : vector<8x128xf32>
    %c3 = arith.constant 3 : index
    %c0_28 = arith.constant 0 : index
    %57 = vector.load %arg6[%c3, %c0_28] : memref<8x128xf32, #tpu.memory_space<vmem>>, vector<1x128xf32>
    %58 = vector.broadcast %57 : vector<1x128xf32> to vector<8x128xf32>
    %59 = arith.addf %56, %58 : vector<8x128xf32>
    %cst_29 = arith.constant 0.000000e+00 : f32
    %60 = vector.broadcast %cst_29 : f32 to vector<8x128xf32>
    %61 = arith.subf %60, %59 : vector<8x128xf32>
    %62 = math.exp %61 : vector<8x128xf32>
    %cst_30 = arith.constant 1.000000e+00 : f32
    %63 = vector.broadcast %cst_30 : f32 to vector<8x128xf32>
    %64 = arith.addf %63, %62 : vector<8x128xf32>
    %65 = tpu.reciprocal %64 {approx = true} : vector<8x128xf32> -> vector<8x128xf32>
    %66 = arith.mulf %59, %65 : vector<8x128xf32>
    %67 = vector.shape_cast %66 : vector<8x128xf32> to vector<1x8x128xf32>
    %c0_31 = arith.constant 0 : index
    %c0_32 = arith.constant 0 : index
    %c0_33 = arith.constant 0 : index
    %68 = vector.load %arg7[%c0_31, %c0_32, %c0_33] : memref<1x8x128xf32, #tpu.memory_space<vmem>>, vector<1x8x128xf32>
    tpu.vector_store %arg7[%c0_31, %c0_32, %c0_33], %67 {strides = array<i32>} : memref<1x8x128xf32, #tpu.memory_space<vmem>>, vector<1x8x128xf32>,
    return
  }
  func.func @transform_0(%arg0: i32) -> (i32, i32, i32) {
    %c0_i32 = arith.constant 0 : i32
    %c0_i32_0 = arith.constant 0 : i32
    %c0_i32_1 = arith.constant 0 : i32
    return %arg0, %c0_i32, %c0_i32_0 : i32, i32, i32
  }
  func.func @transform_1(%arg0: i32) -> (i32, i32, i32) {
    %c0_i32 = arith.constant 0 : i32
    %c0_i32_0 = arith.constant 0 : i32
    %c0_i32_1 = arith.constant 0 : i32
    return %arg0, %c0_i32, %c0_i32_0 : i32, i32, i32
  }
  func.func @transform_2(%arg0: i32) -> (i32, i32) {
    %c0_i32 = arith.constant 0 : i32
    %c0_i32_0 = arith.constant 0 : i32
    %c0_i32_1 = arith.constant 0 : i32
    return %c0_i32, %c0_i32_0 : i32, i32
  }
  func.func @transform_3(%arg0: i32) -> (i32, i32) {
    %c0_i32 = arith.constant 0 : i32
    %c0_i32_0 = arith.constant 0 : i32
    %c0_i32_1 = arith.constant 0 : i32
    return %c0_i32, %c0_i32_0 : i32, i32
  }
  func.func @transform_4(%arg0: i32) -> (i32, i32) {
    %c0_i32 = arith.constant 0 : i32
    %c0_i32_0 = arith.constant 0 : i32
    %c0_i32_1 = arith.constant 0 : i32
    return %c0_i32, %c0_i32_0 : i32, i32
  }
  func.func @transform_5(%arg0: i32) -> (i32, i32) {
    %c0_i32 = arith.constant 0 : i32
    %c0_i32_0 = arith.constant 0 : i32
    %c0_i32_1 = arith.constant 0 : i32
    return %c0_i32, %c0_i32_0 : i32, i32
  }
  func.func @transform_6(%arg0: i32) -> (i32, i32, i32) {
    %c0_i32 = arith.constant 0 : i32
    %c0_i32_0 = arith.constant 0 : i32
    %c0_i32_1 = arith.constant 0 : i32
    return %arg0, %c0_i32, %c0_i32_0 : i32, i32, i32
  }
}

</mosaic_0001>

<llo_original>
// kernel: diffpool_layer_forward.1
$region0: #{diffpool_layer_forward.1}
  #allocation0 [shape = 'u32[]', space=smem, size = 0x4, offset = 0x4, fixed_abs, tag = 'smem constant byte address 0x4 - core index']
  #allocation1 [shape = 'u32[72,128]{1,0:T(1,128)}', space=vmem, size = 0x9000, scoped, tag = 'internal scratch']
  %s0 = inlined_call_operand.vmem [shape: bf16[2,64,64], index: 0, kind: input, shape index: {}]
  %s1 = inlined_call_operand.vmem [shape: bf16[2,64,16], index: 1, kind: input, shape index: {}]
  %s2 = inlined_call_operand.vmem [shape: bf16[16,128], index: 2, kind: input, shape index: {}]
  %s3 = inlined_call_operand.vmem [shape: bf16[128,8], index: 3, kind: input, shape index: {}]
  %s4 = inlined_call_operand.vmem [shape: bf16[128,128], index: 4, kind: input, shape index: {}]
  %s5 = inlined_call_operand.vmem [shape: f32[8,128], index: 5, kind: input, shape index: {}]
  %s6 = inlined_call_operand.hbm [shape: f32[2,8,128], index: 6, kind: output, shape index: {}]
  %s7 = sld [smem:[#allocation0]]
  $region57: #{diffpool_layer_forward.1} parent=0
    _
  %s9 = ssub.s32 1, %s7
  %s10 = scalar_select 0, %s9, %s7
  $region1: #{diffpool_layer_forward.1} parent=0
    #allocation2 [shape = 'u8[8192]{0}', space=vmem, size = 0x2000, scoped, tag = 'output window, operand 0']
    #allocation3 [shape = 's32[2]{0}', space=sflag, size = 0x8, scoped, tag = 'scoped memory for diffpool_layer_forward.1']
    %11 = vsyncpa [#allocation3], 0
    %s12 = scalar_lea.sflag [#allocation3], 1
    %13 = vsyncpa %s12, 0
    loop: start=0, step=1, limit=4
    $region2: #{diffpool_layer_forward.1} parent=1 // loop_pre_header
      _
    $region3: #{diffpool_layer_forward.1} parent=1 // loop_header
      %s15 = sphi 0, %s19
      %p16 = scmp.ge.s32.totalorder %s15, 4
      %s25 = sphi 0, %s27
      %s28 = sphi 0, %s25
      %s29 = sphi 0, %s28
      %s45 = sphi 0, %s29
      %s51 = sphi 0, %s53
      %s54 = sphi 0, %s51
      %s55 = sphi 0, %s54
      %s71 = sphi 0, %s55
      %s75 = sphi 0, %s75
      %s77 = sphi 0, %s75
      %s78 = sphi 0, %s77
      %s92 = sphi 0, %s78
      %s96 = sphi 0, %s96
      %s98 = sphi 0, %s96
      %s99 = sphi 0, %s98
      %s113 = sphi 0, %s99
      %s117 = sphi 0, %s117
      %s119 = sphi 0, %s117
      %s120 = sphi 0, %s119
      %s134 = sphi 0, %s120
      %s138 = sphi 0, %s138
      %s140 = sphi 0, %s138
      %s141 = sphi 0, %s140
      %s155 = sphi 0, %s141
      %s161 = sphi 0, %s163
      %s164 = sphi 0, %s161
      %s165 = sphi 0, %s164
      %s181 = sphi 0, %s165
    $region4: #{diffpool_layer_forward.1} parent=1 // loop_header_branch
      %18 = sbr.rel (%p16) target = $region8
    $region5: #{diffpool_layer_forward.1} parent=1 // loop_body
      %s20 = ssub.s32 %s15, 1
      %s21 = ssub.s32 %s15, 2
      %s22 = sadd.s32 %s15, 1
      %s23 = ssub.s32 %s15, %s22
      %p24 = scmp.eq.s32.totalorder %s23, 0
      %s26 = sadd.s32 %s25, 1
      %s27 = scalar_select %p24, %s25, %s26
      %p30 = pneg %p24
      %p31 = scmp.eq.s32.totalorder %s15, 1
      %p32 = por %p30, %p31
      %p33 = scmp.ne.s32.totalorder %s25, %s28
      %p34 = scmp.eq.s32.totalorder %s15, 0
      %p35 = por %p33, %p34
      %p36 = scmp.ne.s32.totalorder %s25, %s28
      %p37 = scmp.eq.s32.totalorder %s20, 1
      %p38 = por %p36, %p37
      %p39 = scmp.ne.s32.totalorder %s28, %s29
      %p40 = scmp.eq.s32.totalorder %s20, 0
      %p41 = por %p39, %p40
      %p42 = scmp.ne.s32.totalorder %s28, %s29
      %p43 = scmp.eq.s32.totalorder %s21, 1
      %p44 = por %p42, %p43
      %p46 = scmp.ne.s32.totalorder %s29, %s45
      %p47 = scmp.eq.s32.totalorder %s21, 0
      %p48 = por %p46, %p47
      %s49 = ssub.s32 %s15, %s22
      %p50 = scmp.eq.s32.totalorder %s49, 0
      %s52 = sadd.s32 %s51, 1
      %s53 = scalar_select %p50, %s51, %s52
      %p56 = pneg %p50
      %p57 = scmp.eq.s32.totalorder %s15, 1
      %p58 = por %p56, %p57
      %p59 = scmp.ne.s32.totalorder %s51, %s54
      %p60 = scmp.eq.s32.totalorder %s15, 0
      %p61 = por %p59, %p60
      %p62 = scmp.ne.s32.totalorder %s51, %s54
      %p63 = scmp.eq.s32.totalorder %s20, 1
      %p64 = por %p62, %p63
      %p65 = scmp.ne.s32.totalorder %s54, %s55
      %p66 = scmp.eq.s32.totalorder %s20, 0
      %p67 = por %p65, %p66
      %p68 = scmp.ne.s32.totalorder %s54, %s55
      %p69 = scmp.eq.s32.totalorder %s21, 1
      %p70 = por %p68, %p69
      %p72 = scmp.ne.s32.totalorder %s55, %s71
      %p73 = scmp.eq.s32.totalorder %s21, 0
      %p74 = por %p72, %p73
      %s76 = sadd.s32 %s75, 1
      %p79 = scmp.eq.s32.totalorder %s15, 1
      %p80 = scmp.ne.s32.totalorder %s75, %s77
      %p81 = scmp.eq.s32.totalorder %s15, 0
      %p82 = por %p80, %p81
      %p83 = scmp.ne.s32.totalorder %s75, %s77
      %p84 = scmp.eq.s32.totalorder %s20, 1
      %p85 = por %p83, %p84
      %p86 = scmp.ne.s32.totalorder %s77, %s78
      %p87 = scmp.eq.s32.totalorder %s20, 0
      %p88 = por %p86, %p87
      %p89 = scmp.ne.s32.totalorder %s77, %s78
      %p90 = scmp.eq.s32.totalorder %s21, 1
      %p91 = por %p89, %p90
      %p93 = scmp.ne.s32.totalorder %s78, %s92
      %p94 = scmp.eq.s32.totalorder %s21, 0
      %p95 = por %p93, %p94
      %s97 = sadd.s32 %s96, 1
      %p100 = scmp.eq.s32.totalorder %s15, 1
      %p101 = scmp.ne.s32.totalorder %s96, %s98
      %p102 = scmp.eq.s32.totalorder %s15, 0
      %p103 = por %p101, %p102
      %p104 = scmp.ne.s32.totalorder %s96, %s98
      %p105 = scmp.eq.s32.totalorder %s20, 1
      %p106 = por %p104, %p105
      %p107 = scmp.ne.s32.totalorder %s98, %s99
      %p108 = scmp.eq.s32.totalorder %s20, 0
      %p109 = por %p107, %p108
      %p110 = scmp.ne.s32.totalorder %s98, %s99
      %p111 = scmp.eq.s32.totalorder %s21, 1
      %p112 = por %p110, %p111
      %p114 = scmp.ne.s32.totalorder %s99, %s113
      %p115 = scmp.eq.s32.totalorder %s21, 0
      %p116 = por %p114, %p115
      %s118 = sadd.s32 %s117, 1
      %p121 = scmp.eq.s32.totalorder %s15, 1
      %p122 = scmp.ne.s32.totalorder %s117, %s119
      %p123 = scmp.eq.s32.totalorder %s15, 0
      %p124 = por %p122, %p123
      %p125 = scmp.ne.s32.totalorder %s117, %s119
      %p126 = scmp.eq.s32.totalorder %s20, 1
      %p127 = por %p125, %p126
      %p128 = scmp.ne.s32.totalorder %s119, %s120
      %p129 = scmp.eq.s32.totalorder %s20, 0
      %p130 = por %p128, %p129
      %p131 = scmp.ne.s32.totalorder %s119, %s120
      %p132 = scmp.eq.s32.totalorder %s21, 1
      %p133 = por %p131, %p132
      %p135 = scmp.ne.s32.totalorder %s120, %s134
      %p136 = scmp.eq.s32.totalorder %s21, 0
      %p137 = por %p135, %p136
      %s139 = sadd.s32 %s138, 1
      %p142 = scmp.eq.s32.totalorder %s15, 1
      %p143 = scmp.ne.s32.totalorder %s138, %s140
      %p144 = scmp.eq.s32.totalorder %s15, 0
      %p145 = por %p143, %p144
      %p146 = scmp.ne.s32.totalorder %s138, %s140
      %p147 = scmp.eq.s32.totalorder %s20, 1
      %p148 = por %p146, %p147
      %p149 = scmp.ne.s32.totalorder %s140, %s141
      %p150 = scmp.eq.s32.totalorder %s20, 0
      %p151 = por %p149, %p150
      %p152 = scmp.ne.s32.totalorder %s140, %s141
      %p153 = scmp.eq.s32.totalorder %s21, 1
      %p154 = por %p152, %p153
      %p156 = scmp.ne.s32.totalorder %s141, %s155
      %p157 = scmp.eq.s32.totalorder %s21, 0
      %p158 = por %p156, %p157
      %s159 = ssub.s32 %s15, %s22
      %p160 = scmp.eq.s32.totalorder %s159, 0
      %s162 = sadd.s32 %s161, 1
      %s163 = scalar_select %p160, %s161, %s162
      %p166 = pneg %p160
      %p167 = scmp.eq.s32.totalorder %s15, 1
      %p168 = por %p166, %p167
      %p169 = scmp.ne.s32.totalorder %s161, %s164
      %p170 = scmp.eq.s32.totalorder %s15, 0
      %p171 = por %p169, %p170
      %p172 = scmp.ne.s32.totalorder %s161, %s164
      %p173 = scmp.eq.s32.totalorder %s20, 1
      %p174 = por %p172, %p173
      %p175 = scmp.ne.s32.totalorder %s164, %s165
      %p176 = scmp.eq.s32.totalorder %s20, 0
      %p177 = por %p175, %p176
      %p178 = scmp.ne.s32.totalorder %s164, %s165
      %p179 = scmp.eq.s32.totalorder %s21, 1
      %p180 = por %p178, %p179
      %p182 = scmp.ne.s32.totalorder %s165, %s181
      %p183 = scmp.eq.s32.totalorder %s21, 0
      %p184 = por %p182, %p183
      %p185 = scmp.le.s32.totalorder 1, %s15
      %p186 = scmp.lt.s32.totalorder %s15, 3
      %p187 = pnand %p185, %p186
      %p188 = pneg %p187
      // Predicated region
      $region9: #{diffpool_layer_forward.1} parent=5 // pred_check
        _
      $region10: #{diffpool_layer_forward.1} parent=5 // pred_check_branch
        %190 = sbr.rel (%p187) target = $region12
      $region11: #{diffpool_layer_forward.1} parent=5 // pred_region
        %s191 = ssub.s32 %s15, 1
        // Predicated region
        $region13: #{diffpool_layer_forward.1} parent=11 // pred_check
          %p192 = pneg %p88
        $region14: #{diffpool_layer_forward.1} parent=11 // pred_check_branch
          %194 = sbr.rel (%p192) target = $region16
        $region15: #{diffpool_layer_forward.1} parent=11 // pred_region
          _
        $region16: #{diffpool_layer_forward.1} parent=11 // pred_fallthru
          _
        // Predicated region
        $region17: #{diffpool_layer_forward.1} parent=11 // pred_check
          %p195 = pneg %p109
        $region18: #{diffpool_layer_forward.1} parent=11 // pred_check_branch
          %197 = sbr.rel (%p195) target = $region20
        $region19: #{diffpool_layer_forward.1} parent=11 // pred_region
          _
        $region20: #{diffpool_layer_forward.1} parent=11 // pred_fallthru
          _
        // Predicated region
        $region21: #{diffpool_layer_forward.1} parent=11 // pred_check
          %p198 = pneg %p130
        $region22: #{diffpool_layer_forward.1} parent=11 // pred_check_branch
          %200 = sbr.rel (%p198) target = $region24
        $region23: #{diffpool_layer_forward.1} parent=11 // pred_region
          _
        $region24: #{diffpool_layer_forward.1} parent=11 // pred_fallthru
          _
        // Predicated region
        $region25: #{diffpool_layer_forward.1} parent=11 // pred_check
          %p201 = pneg %p151
        $region26: #{diffpool_layer_forward.1} parent=11 // pred_check_branch
          %203 = sbr.rel (%p201) target = $region28
        $region27: #{diffpool_layer_forward.1} parent=11 // pred_region
          _
        $region28: #{diffpool_layer_forward.1} parent=11 // pred_fallthru
          _
      $region12: #{diffpool_layer_forward.1} parent=5 // pred_fallthru
        _
      %p204 = scmp.lt.s32.totalorder %s15, 2
      // Predicated region
      $region29: #{diffpool_layer_forward.1} parent=5 // pred_check
        %p205 = pneg %p204
      $region30: #{diffpool_layer_forward.1} parent=5 // pred_check_branch
        %207 = sbr.rel (%p205) target = $region32
      $region31: #{diffpool_layer_forward.1} parent=5 // pred_region
        // Predicated region
        $region33: #{diffpool_layer_forward.1} parent=31 // pred_check
          %p208 = pneg %p35
        $region34: #{diffpool_layer_forward.1} parent=31 // pred_check_branch
          %210 = sbr.rel (%p208) target = $region36
        $region35: #{diffpool_layer_forward.1} parent=31 // pred_region
          %p211 = scmp.lt.s32.totalorder %s15, 1
          %s212 = scalar_select %p211, %s15, 1
          %s213 = smul.addr %s212, 8
          %s214 = smul.addr %s213, 4
          %s215 = scalar_lea.vmem %s0, %s214
        $region36: #{diffpool_layer_forward.1} parent=31 // pred_fallthru
          _
        // Predicated region
        $region37: #{diffpool_layer_forward.1} parent=31 // pred_check
          %p216 = pneg %p61
        $region38: #{diffpool_layer_forward.1} parent=31 // pred_check_branch
          %218 = sbr.rel (%p216) target = $region40
        $region39: #{diffpool_layer_forward.1} parent=31 // pred_region
          %p219 = scmp.lt.s32.totalorder %s15, 1
          %s220 = scalar_select %p219, %s15, 1
          %s221 = smul.addr %s220, 8
          %s222 = smul.addr %s221, 4
          %s223 = scalar_lea.vmem %s1, %s222
        $region40: #{diffpool_layer_forward.1} parent=31 // pred_fallthru
          _
      $region32: #{diffpool_layer_forward.1} parent=5 // pred_fallthru
        _
      %p224 = scmp.le.s32.totalorder 1, %s15
      %p225 = scmp.lt.s32.totalorder %s15, 3
      %p226 = pnand %p224, %p225
      %p227 = pneg %p226
      // Predicated region
      $region41: #{diffpool_layer_forward.1} parent=5 // pred_check
        _
      $region42: #{diffpool_layer_forward.1} parent=5 // pred_check_branch
        %229 = sbr.rel (%p226) target = $region44
      $region43: #{diffpool_layer_forward.1} parent=5 // pred_region
        %s230 = ssub.s32 %s15, 1
        %p231 = scmp.lt.s32.totalorder %s20, 1
        %s232 = scalar_select %p231, %s20, 1
        %s233 = smul.addr %s232, 8
        %s234 = smul.addr %s233, 4
        %s235 = scalar_lea.vmem %s0, %s234
        %p236 = pneg %p41
        %p237 = pneg %p38
        %p238 = scmp.lt.s32.totalorder %s20, 1
        %s239 = scalar_select %p238, %s20, 1
        %s240 = smul.addr %s239, 8
        %s241 = smul.addr %s240, 4
        %s242 = scalar_lea.vmem %s1, %s241
        %p243 = pneg %p67
        %p244 = pneg %p64
        %p245 = pneg %p88
        %p246 = pneg %p85
        %p247 = pneg %p109
        %p248 = pneg %p106
        %p249 = pneg %p130
        %p250 = pneg %p127
        %p251 = pneg %p151
        %p252 = pneg %p148
        %p253 = pneg %p177
        %p254 = pneg %p174
        %s255 = sand.u32 %s164, 1
        %s256 = scalar_lea.sflag [#allocation3], %s255
        %s257 = sand.u32 %s164, 1
        %s258 = smul.addr %s257, 8
        %s259 = scalar_lea.vmem [#allocation2], %s258
        %p260 = scmp.lt.s32.totalorder %s20, 1
        %s261 = scalar_select %p260, %s20, 1
        %s262 = smul.addr %s261, 8
        %s263 = smul.addr %s262, 4
        %s264 = scalar_lea.vmem %s0, %s263
        %p265 = scmp.lt.s32.totalorder %s20, 1
        %s266 = scalar_select %p265, %s20, 1
        %s267 = smul.addr %s266, 8
        %s268 = smul.addr %s267, 4
        %s269 = scalar_lea.vmem %s1, %s268
        %v271 = vld [vmem:[%s264] sm:$0xf]
        %v272 = vld [vmem:[%s264 + $0x4] sm:$0xf]
        %v273 = vld [vmem:[%s264 + $0x8] sm:$0xf]
        %v274 = vld [vmem:[%s264 + $0xc] sm:$0xf]
        %v275 = vld [vmem:[%s264 + $0x10] sm:$0xf]
        %v276 = vld [vmem:[%s264 + $0x14] sm:$0xf]
        %v277 = vld [vmem:[%s264 + $0x18] sm:$0xf]
        %v278 = vld [vmem:[%s264 + $0x1c] sm:$0xf]
        %v279 = vld [vmem:[%s269] sm:$0xf]
        %v280 = vld [vmem:[%s269 + $0x4] sm:$0xf]
        %v281 = vld [vmem:[%s269 + $0x8] sm:$0xf]
        %v282 = vld [vmem:[%s269 + $0xc] sm:$0xf]
        %v283 = vld [vmem:[%s269 + $0x10] sm:$0xf]
        %v284 = vld [vmem:[%s269 + $0x14] sm:$0xf]
        %v285 = vld [vmem:[%s269 + $0x18] sm:$0xf]
        %v286 = vld [vmem:[%s269 + $0x1c] sm:$0xf]
        %v295 = vunpack.c.l.b16 %v271
        %v296 = vunpack.c.l.b16 %v272
        %v297 = vunpack.c.l.b16 %v273
        %v298 = vunpack.c.l.b16 %v274
        %v299 = vunpack.c.l.b16 %v275
        %v300 = vunpack.c.l.b16 %v276
        %v301 = vunpack.c.l.b16 %v277
        %v302 = vunpack.c.l.b16 %v278
        %v303 = vpack.c.b16 %v296, %v295
        %v304 = vpack.c.b16 %v298, %v297
        %v305 = vpack.c.b16 %v300, %v299
        %v306 = vpack.c.b16 %v302, %v301
        %v315 = vunpack.c.l.b16 %v279
        %v316 = vunpack.c.l.b16 %v280
        %v317 = vunpack.c.l.b16 %v281
        %v318 = vunpack.c.l.b16 %v282
        %v319 = vunpack.c.l.b16 %v283
        %v320 = vunpack.c.l.b16 %v284
        %v321 = vunpack.c.l.b16 %v285
        %v322 = vunpack.c.l.b16 %v286
        %v323 = vpack.c.b16 %v316, %v315
        %v324 = vpack.c.b16 %v318, %v317
        %v325 = vpack.c.b16 %v320, %v319
        %v326 = vpack.c.b16 %v322, %v321
        %vm331 = vcmask 523264
        %v333 = vsel %vm331, %v303, 0
        %v336 = vsel %vm331, %v304, 0
        %v339 = vsel %vm331, %v305, 0
        %v342 = vsel %vm331, %v306, 0
        %344 = vmatpush.bf16.msra.mxu0 0
        %345 = vmatpush.bf16.msra.mxu0 0
        %346 = vmatpush.bf16.msra.mxu0 0
        %347 = vmatpush.bf16.msra.mxu0 0
        %348 = vmatpush.bf16.msra.mxu0 %v326
        %349 = vmatpush.bf16.msra.mxu0 %v325
        %350 = vmatpush.bf16.msra.mxu0 %v324
        %351 = vmatpush.bf16.msra.mxu0 %v323
        %352 = vmatmul.bf16.gmra.mxu0 %v333
        %v353 = vpop.f32.mrf.mxu0
        %v354 = vadd.f32 0.0, %v353
        %v355 = vpop.f32.mrf.mxu0
        %v356 = vadd.f32 0.0, %v355
        %357 = vmatmul.bf16.gmra.mxu0 %v336
        %v358 = vpop.f32.mrf.mxu0
        %v359 = vadd.f32 0.0, %v358
        %v360 = vpop.f32.mrf.mxu0
        %v361 = vadd.f32 0.0, %v360
        %362 = vmatmul.bf16.gmra.mxu0 %v339
        %v363 = vpop.f32.mrf.mxu0
        %v364 = vadd.f32 0.0, %v363
        %v365 = vpop.f32.mrf.mxu0
        %v366 = vadd.f32 0.0, %v365
        %367 = vmatmul.bf16.gmra.mxu0 %v342
        %v368 = vpop.f32.mrf.mxu0
        %v369 = vadd.f32 0.0, %v368
        %v370 = vpop.f32.mrf.mxu0
        %v371 = vadd.f32 0.0, %v370
        %372 = vdwg.mxu0
        %v373 = vpack.c.bf16 %v356, %v354
        %v374 = vpack.c.bf16 %v361, %v359
        %v375 = vpack.c.bf16 %v366, %v364
        %v376 = vpack.c.bf16 %v371, %v369
        %v377 = vld [vmem:[%s2] sm:$0xf]
        %v378 = vld [vmem:[%s2 + $0x4] sm:$0xf]
        %v379 = vld [vmem:[%s5] sm:$0x1]
        %v380 = vperm.slane %v379, 0
        %v383 = vunpack.c.l.b16 %v377
        %v384 = vunpack.c.l.b16 %v378
        %v385 = vpack.c.b16 %v384, %v383
        %vm387 = vcmask 130048
        %v389 = vsel %vm387, %v373, 0
        %v392 = vsel %vm387, %v374, 0
        %v395 = vsel %vm387, %v375, 0
        %v398 = vsel %vm387, %v376, 0
        %400 = vmatpush.bf16.msra.mxu0 0
        %401 = vmatpush.bf16.msra.mxu0 0
        %402 = vmatpush.bf16.msra.mxu0 0
        %403 = vmatpush.bf16.msra.mxu0 0
        %404 = vmatpush.bf16.msra.mxu0 0
        %405 = vmatpush.bf16.msra.mxu0 0
        %406 = vmatpush.bf16.msra.mxu0 0
        %407 = vmatpush.bf16.msra.mxu0 %v385
        %408 = vmatmul.bf16.gmra.mxu0 %v389
        %v409 = vpop.f32.mrf.mxu0
        %v410 = vadd.f32 %v380, %v409
        %v411 = vpop.f32.mrf.mxu0
        %v412 = vadd.f32 %v380, %v411
        %413 = vmatmul.bf16.gmra.mxu0 %v392
        %v414 = vpop.f32.mrf.mxu0
        %v415 = vadd.f32 %v380, %v414
        %v416 = vpop.f32.mrf.mxu0
        %v417 = vadd.f32 %v380, %v416
        %418 = vmatmul.bf16.gmra.mxu0 %v395
        %v419 = vpop.f32.mrf.mxu0
        %v420 = vadd.f32 %v380, %v419
        %v421 = vpop.f32.mrf.mxu0
        %v422 = vadd.f32 %v380, %v421
        %423 = vmatmul.bf16.gmra.mxu0 %v398
        %v424 = vpop.f32.mrf.mxu0
        %v425 = vadd.f32 %v380, %v424
        %v426 = vpop.f32.mrf.mxu0
        %v427 = vadd.f32 %v380, %v426
        %428 = vdwg.mxu0
        %v429 = vmax.f32 %v410, 0.0
        %v430 = vmax.f32 %v412, 0.0
        %v431 = vmax.f32 %v415, 0.0
        %v432 = vmax.f32 %v417, 0.0
        %v433 = vmax.f32 %v420, 0.0
        %v434 = vmax.f32 %v422, 0.0
        %v435 = vmax.f32 %v425, 0.0
        %v436 = vmax.f32 %v427, 0.0
        %v437 = vpack.c.bf16 %v430, %v429
        %v438 = vpack.c.bf16 %v432, %v431
        %v439 = vpack.c.bf16 %v434, %v433
        %v440 = vpack.c.bf16 %v436, %v435
        %v441 = vld [vmem:[%s3] sm:$0xf]
        %v442 = vld [vmem:[%s3 + $0x4] sm:$0xf]
        %v443 = vld [vmem:[%s3 + $0x8] sm:$0xf]
        %v444 = vld [vmem:[%s3 + $0xc] sm:$0xf]
        %v445 = vld [vmem:[%s3 + $0x10] sm:$0xf]
        %v446 = vld [vmem:[%s3 + $0x14] sm:$0xf]
        %v447 = vld [vmem:[%s3 + $0x18] sm:$0xf]
        %v448 = vld [vmem:[%s3 + $0x1c] sm:$0xf]
        %v449 = vld [vmem:[%s3 + $0x20] sm:$0xf]
        %v450 = vld [vmem:[%s3 + $0x24] sm:$0xf]
        %v451 = vld [vmem:[%s3 + $0x28] sm:$0xf]
        %v452 = vld [vmem:[%s3 + $0x2c] sm:$0xf]
        %v453 = vld [vmem:[%s3 + $0x30] sm:$0xf]
        %v454 = vld [vmem:[%s3 + $0x34] sm:$0xf]
        %v455 = vld [vmem:[%s3 + $0x38] sm:$0xf]
        %v456 = vld [vmem:[%s3 + $0x3c] sm:$0xf]
        %v473 = vunpack.c.l.b16 %v441
        %v474 = vunpack.c.l.b16 %v442
        %v475 = vunpack.c.l.b16 %v443
        %v476 = vunpack.c.l.b16 %v444
        %v477 = vunpack.c.l.b16 %v445
        %v478 = vunpack.c.l.b16 %v446
        %v479 = vunpack.c.l.b16 %v447
        %v480 = vunpack.c.l.b16 %v448
        %v481 = vunpack.c.l.b16 %v449
        %v482 = vunpack.c.l.b16 %v450
        %v483 = vunpack.c.l.b16 %v451
        %v484 = vunpack.c.l.b16 %v452
        %v485 = vunpack.c.l.b16 %v453
        %v486 = vunpack.c.l.b16 %v454
        %v487 = vunpack.c.l.b16 %v455
        %v488 = vunpack.c.l.b16 %v456
        %v489 = vpack.c.b16 %v474, %v473
        %v490 = vpack.c.b16 %v476, %v475
        %v491 = vpack.c.b16 %v478, %v477
        %v492 = vpack.c.b16 %v480, %v479
        %v493 = vpack.c.b16 %v482, %v481
        %v494 = vpack.c.b16 %v484, %v483
        %v495 = vpack.c.b16 %v486, %v485
        %v496 = vpack.c.b16 %v488, %v487
        %505 = vmatpush.bf16.msra.mxu0 %v496
        %506 = vmatpush.bf16.msra.mxu0 %v495
        %507 = vmatpush.bf16.msra.mxu0 %v494
        %508 = vmatpush.bf16.msra.mxu0 %v493
        %509 = vmatpush.bf16.msra.mxu0 %v492
        %510 = vmatpush.bf16.msra.mxu0 %v491
        %511 = vmatpush.bf16.msra.mxu0 %v490
        %512 = vmatpush.bf16.msra.mxu0 %v489
        %513 = vmatmul.bf16.gmra.mxu0 %v437
        %v514 = vpop.f32.mrf.mxu0
        %v515 = vadd.f32 0.0, %v514
        %v516 = vpop.f32.mrf.mxu0
        %v517 = vadd.f32 0.0, %v516
        %518 = vmatmul.bf16.gmra.mxu0 %v438
        %v519 = vpop.f32.mrf.mxu0
        %v520 = vadd.f32 0.0, %v519
        %v521 = vpop.f32.mrf.mxu0
        %v522 = vadd.f32 0.0, %v521
        %523 = vmatmul.bf16.gmra.mxu0 %v439
        %v524 = vpop.f32.mrf.mxu0
        %v525 = vadd.f32 0.0, %v524
        %v526 = vpop.f32.mrf.mxu0
        %v527 = vadd.f32 0.0, %v526
        %528 = vmatmul.bf16.gmra.mxu0 %v440
        %v529 = vpop.f32.mrf.mxu0
        %v530 = vadd.f32 0.0, %v529
        %v531 = vpop.f32.mrf.mxu0
        %v532 = vadd.f32 0.0, %v531
        %533 = vdwg.mxu0
        %vm534 = vcmask 64512
        %v535 = vsel %vm534, %v515, -inf
        %536 = vmax.xlane.f32.xlu0 %v535
        %v537 = vpop.xlane.xlu0 %536
        %v538 = vsel %vm534, %v517, -inf
        %539 = vmax.xlane.f32.xlu0 %v538
        %v540 = vpop.xlane.xlu0 %539
        %v541 = vsel %vm534, %v520, -inf
        %542 = vmax.xlane.f32.xlu0 %v541
        %v543 = vpop.xlane.xlu0 %542
        %v544 = vsel %vm534, %v522, -inf
        %545 = vmax.xlane.f32.xlu0 %v544
        %v546 = vpop.xlane.xlu0 %545
        %v547 = vsel %vm534, %v525, -inf
        %548 = vmax.xlane.f32.xlu0 %v547
        %v549 = vpop.xlane.xlu0 %548
        %v550 = vsel %vm534, %v527, -inf
        %551 = vmax.xlane.f32.xlu0 %v550
        %v552 = vpop.xlane.xlu0 %551
        %v553 = vsel %vm534, %v530, -inf
        %554 = vmax.xlane.f32.xlu0 %v553
        %v555 = vpop.xlane.xlu0 %554
        %v556 = vsel %vm534, %v532, -inf
        %557 = vmax.xlane.f32.xlu0 %v556
        %v558 = vpop.xlane.xlu0 %557
        %v559 = vsub.f32 %v515, %v537
        %v560 = vsub.f32 %v517, %v540
        %v561 = vsub.f32 %v520, %v543
        %v562 = vsub.f32 %v522, %v546
        %v563 = vsub.f32 %v525, %v549
        %v564 = vsub.f32 %v527, %v552
        %v565 = vsub.f32 %v530, %v555
        %v566 = vsub.f32 %v532, %v558
        %v567 = vmul.f32 %v559, 1.442695
        %v568 = vpow.pop %v567
        %v569 = vmul.f32 %v560, 1.442695
        %v570 = vpow.pop %v569
        %v571 = vmul.f32 %v561, 1.442695
        %v572 = vpow.pop %v571
        %v573 = vmul.f32 %v562, 1.442695
        %v574 = vpow.pop %v573
        %v575 = vmul.f32 %v563, 1.442695
        %v576 = vpow.pop %v575
        %v577 = vmul.f32 %v564, 1.442695
        %v578 = vpow.pop %v577
        %v579 = vmul.f32 %v565, 1.442695
        %v580 = vpow.pop %v579
        %v581 = vmul.f32 %v566, 1.442695
        %v582 = vpow.pop %v581
        %v583 = vsel %vm534, %v568, 0.0
        %584 = vadd.xlane.f32.xlu0 %v583
        %v585 = vpop.xlane.xlu0 %584
        %v586 = vsel %vm534, %v570, 0.0
        %587 = vadd.xlane.f32.xlu0 %v586
        %v588 = vpop.xlane.xlu0 %587
        %v589 = vsel %vm534, %v572, 0.0
        %590 = vadd.xlane.f32.xlu0 %v589
        %v591 = vpop.xlane.xlu0 %590
        %v592 = vsel %vm534, %v574, 0.0
        %593 = vadd.xlane.f32.xlu0 %v592
        %v594 = vpop.xlane.xlu0 %593
        %v595 = vsel %vm534, %v576, 0.0
        %596 = vadd.xlane.f32.xlu0 %v595
        %v597 = vpop.xlane.xlu0 %596
        %v598 = vsel %vm534, %v578, 0.0
        %599 = vadd.xlane.f32.xlu0 %v598
        %v600 = vpop.xlane.xlu0 %599
        %v601 = vsel %vm534, %v580, 0.0
        %602 = vadd.xlane.f32.xlu0 %v601
        %v603 = vpop.xlane.xlu0 %602
        %v604 = vsel %vm534, %v582, 0.0
        %605 = vadd.xlane.f32.xlu0 %v604
        %v606 = vpop.xlane.xlu0 %605
        %v607 = vrcp.pop %v585
        %v608 = vmul.f32 %v585, %v607
        %v609 = vsub.f32 1.0, %v608
        %v610 = vmul.f32 %v607, %v609
        %v611 = vadd.f32 %v607, %v610
        %vm612 = vweird.f32 %v585
        %vm613 = vweird.f32 %v607
        %vm614 = vmor %vm612, %vm613
        %v615 = vsel %vm614, %v607, %v611
        %v616 = vand.u32 2147483647, %v585
        %vm617 = vcmp.eq.f32.partialorder %v616, 8.507059e+37
        %v618 = vand.u32 %v585, 2147483648
        %v619 = vor.u32 1.1754944e-38, %v618
        %v620 = vsel %vm617, %v619, %v615
        %v621 = vmul.f32 %v568, %v620
        %v622 = vrcp.pop %v588
        %v623 = vmul.f32 %v588, %v622
        %v624 = vsub.f32 1.0, %v623
        %v625 = vmul.f32 %v622, %v624
        %v626 = vadd.f32 %v622, %v625
        %vm627 = vweird.f32 %v588
        %vm628 = vweird.f32 %v622
        %vm629 = vmor %vm627, %vm628
        %v630 = vsel %vm629, %v622, %v626
        %v631 = vand.u32 2147483647, %v588
        %vm632 = vcmp.eq.f32.partialorder %v631, 8.507059e+37
        %v633 = vand.u32 %v588, 2147483648
        %v634 = vor.u32 1.1754944e-38, %v633
        %v635 = vsel %vm632, %v634, %v630
        %v636 = vmul.f32 %v570, %v635
        %v637 = vrcp.pop %v591
        %v638 = vmul.f32 %v591, %v637
        %v639 = vsub.f32 1.0, %v638
        %v640 = vmul.f32 %v637, %v639
        %v641 = vadd.f32 %v637, %v640
        %vm642 = vweird.f32 %v591
        %vm643 = vweird.f32 %v637
        %vm644 = vmor %vm642, %vm643
        %v645 = vsel %vm644, %v637, %v641
        %v646 = vand.u32 2147483647, %v591
        %vm647 = vcmp.eq.f32.partialorder %v646, 8.507059e+37
        %v648 = vand.u32 %v591, 2147483648
        %v649 = vor.u32 1.1754944e-38, %v648
        %v650 = vsel %vm647, %v649, %v645
        %v651 = vmul.f32 %v572, %v650
        %v652 = vrcp.pop %v594
        %v653 = vmul.f32 %v594, %v652
        %v654 = vsub.f32 1.0, %v653
        %v655 = vmul.f32 %v652, %v654
        %v656 = vadd.f32 %v652, %v655
        %vm657 = vweird.f32 %v594
        %vm658 = vweird.f32 %v652
        %vm659 = vmor %vm657, %vm658
        %v660 = vsel %vm659, %v652, %v656
        %v661 = vand.u32 2147483647, %v594
        %vm662 = vcmp.eq.f32.partialorder %v661, 8.507059e+37
        %v663 = vand.u32 %v594, 2147483648
        %v664 = vor.u32 1.1754944e-38, %v663
        %v665 = vsel %vm662, %v664, %v660
        %v666 = vmul.f32 %v574, %v665
        %v667 = vrcp.pop %v597
        %v668 = vmul.f32 %v597, %v667
        %v669 = vsub.f32 1.0, %v668
        %v670 = vmul.f32 %v667, %v669
        %v671 = vadd.f32 %v667, %v670
        %vm672 = vweird.f32 %v597
        %vm673 = vweird.f32 %v667
        %vm674 = vmor %vm672, %vm673
        %v675 = vsel %vm674, %v667, %v671
        %v676 = vand.u32 2147483647, %v597
        %vm677 = vcmp.eq.f32.partialorder %v676, 8.507059e+37
        %v678 = vand.u32 %v597, 2147483648
        %v679 = vor.u32 1.1754944e-38, %v678
        %v680 = vsel %vm677, %v679, %v675
        %v681 = vmul.f32 %v576, %v680
        %v682 = vrcp.pop %v600
        %v683 = vmul.f32 %v600, %v682
        %v684 = vsub.f32 1.0, %v683
        %v685 = vmul.f32 %v682, %v684
        %v686 = vadd.f32 %v682, %v685
        %vm687 = vweird.f32 %v600
        %vm688 = vweird.f32 %v682
        %vm689 = vmor %vm687, %vm688
        %v690 = vsel %vm689, %v682, %v686
        %v691 = vand.u32 2147483647, %v600
        %vm692 = vcmp.eq.f32.partialorder %v691, 8.507059e+37
        %v693 = vand.u32 %v600, 2147483648
        %v694 = vor.u32 1.1754944e-38, %v693
        %v695 = vsel %vm692, %v694, %v690
        %v696 = vmul.f32 %v578, %v695
        %v697 = vrcp.pop %v603
        %v698 = vmul.f32 %v603, %v697
        %v699 = vsub.f32 1.0, %v698
        %v700 = vmul.f32 %v697, %v699
        %v701 = vadd.f32 %v697, %v700
        %vm702 = vweird.f32 %v603
        %vm703 = vweird.f32 %v697
        %vm704 = vmor %vm702, %vm703
        %v705 = vsel %vm704, %v697, %v701
        %v706 = vand.u32 2147483647, %v603
        %vm707 = vcmp.eq.f32.partialorder %v706, 8.507059e+37
        %v708 = vand.u32 %v603, 2147483648
        %v709 = vor.u32 1.1754944e-38, %v708
        %v710 = vsel %vm707, %v709, %v705
        %v711 = vmul.f32 %v580, %v710
        %v712 = vrcp.pop %v606
        %v713 = vmul.f32 %v606, %v712
        %v714 = vsub.f32 1.0, %v713
        %v715 = vmul.f32 %v712, %v714
        %v716 = vadd.f32 %v712, %v715
        %vm717 = vweird.f32 %v606
        %vm718 = vweird.f32 %v712
        %vm719 = vmor %vm717, %vm718
        %v720 = vsel %vm719, %v712, %v716
        %v721 = vand.u32 2147483647, %v606
        %vm722 = vcmp.eq.f32.partialorder %v721, 8.507059e+37
        %v723 = vand.u32 %v606, 2147483648
        %v724 = vor.u32 1.1754944e-38, %v723
        %v725 = vsel %vm722, %v724, %v720
        %v726 = vmul.f32 %v582, %v725
        %v727 = vpack.c.bf16 %v636, %v621
        %v728 = vpack.c.bf16 %v666, %v651
        %v729 = vpack.c.bf16 %v696, %v681
        %v730 = vpack.c.bf16 %v726, %v711
        %731 = vxpose.xlu0.c.b16.start [1/8] %v727, 128
        %732 = vxpose.xlu0.c.b16.cont [2/8] %v728, 128
        %733 = vxpose.xlu0.c.b16.cont [3/8] %v729, 128
        %734 = vxpose.xlu0.c.b16.cont [4/8] %v730, 128
        %735 = vxpose.xlu0.c.b16.cont [5/8] 0, 128
        %736 = vxpose.xlu0.c.b16.cont [6/8] 0, 128
        %737 = vxpose.xlu0.c.b16.cont [7/8] 0, 128
        %738 = vxpose.xlu0.c.b16.end [8/8] 0, 128
        %v739 = vpop.trf.xlu0
        %v740 = vpop.trf.xlu0
        %v741 = vpop.trf.xlu0
        %v742 = vpop.trf.xlu0
        %v743 = vpop.trf.xlu0
        %v744 = vpop.trf.xlu0
        %v745 = vpop.trf.xlu0
        %v746 = vpop.trf.xlu0
        %v748 = vsel %vm331, %v739, 0
        %750 = vmatpush.bf16.msra.mxu0 0
        %751 = vmatpush.bf16.msra.mxu0 0
        %752 = vmatpush.bf16.msra.mxu0 0
        %753 = vmatpush.bf16.msra.mxu0 0
        %754 = vmatpush.bf16.msra.mxu0 %v440
        %755 = vmatpush.bf16.msra.mxu0 %v439
        %756 = vmatpush.bf16.msra.mxu0 %v438
        %757 = vmatpush.bf16.msra.mxu0 %v437
        %758 = vmatmul.bf16.gmra.mxu0 %v748
        %v759 = vpop.f32.mrf.mxu0
        %v760 = vadd.f32 0.0, %v759
        %v761 = vpop.f32.mrf.mxu0
        %762 = vdwg.mxu0
        %v763 = vpack.c.bf16 %v760, %v760
        %v764 = vld [vmem:[%s4] sm:$0xf]
        %v765 = vld [vmem:[%s4 + $0x4] sm:$0xf]
        %v766 = vld [vmem:[%s4 + $0x8] sm:$0xf]
        %v767 = vld [vmem:[%s4 + $0xc] sm:$0xf]
        %v768 = vld [vmem:[%s4 + $0x10] sm:$0xf]
        %v769 = vld [vmem:[%s4 + $0x14] sm:$0xf]
        %v770 = vld [vmem:[%s4 + $0x18] sm:$0xf]
        %v771 = vld [vmem:[%s4 + $0x1c] sm:$0xf]
        %v772 = vld [vmem:[%s4 + $0x20] sm:$0xf]
        %v773 = vld [vmem:[%s4 + $0x24] sm:$0xf]
        %v774 = vld [vmem:[%s4 + $0x28] sm:$0xf]
        %v775 = vld [vmem:[%s4 + $0x2c] sm:$0xf]
        %v776 = vld [vmem:[%s4 + $0x30] sm:$0xf]
        %v777 = vld [vmem:[%s4 + $0x34] sm:$0xf]
        %v778 = vld [vmem:[%s4 + $0x38] sm:$0xf]
        %v779 = vld [vmem:[%s4 + $0x3c] sm:$0xf]
        %v780 = vld [vmem:[%s5 + $0x1] sm:$0x1]
        %v781 = vperm.slane %v780, 0
        %v798 = vunpack.c.l.b16 %v764
        %v799 = vunpack.c.l.b16 %v765
        %v800 = vunpack.c.l.b16 %v766
        %v801 = vunpack.c.l.b16 %v767
        %v802 = vunpack.c.l.b16 %v768
        %v803 = vunpack.c.l.b16 %v769
        %v804 = vunpack.c.l.b16 %v770
        %v805 = vunpack.c.l.b16 %v771
        %v806 = vunpack.c.l.b16 %v772
        %v807 = vunpack.c.l.b16 %v773
        %v808 = vunpack.c.l.b16 %v774
        %v809 = vunpack.c.l.b16 %v775
        %v810 = vunpack.c.l.b16 %v776
        %v811 = vunpack.c.l.b16 %v777
        %v812 = vunpack.c.l.b16 %v778
        %v813 = vunpack.c.l.b16 %v779
        %v814 = vpack.c.b16 %v799, %v798
        %v815 = vpack.c.b16 %v801, %v800
        %v816 = vpack.c.b16 %v803, %v802
        %v817 = vpack.c.b16 %v805, %v804
        %v818 = vpack.c.b16 %v807, %v806
        %v819 = vpack.c.b16 %v809, %v808
        %v820 = vpack.c.b16 %v811, %v810
        %v821 = vpack.c.b16 %v813, %v812
        %830 = vmatpush.bf16.msra.mxu0 %v821
        %831 = vmatpush.bf16.msra.mxu0 %v820
        %832 = vmatpush.bf16.msra.mxu0 %v819
        %833 = vmatpush.bf16.msra.mxu0 %v818
        %834 = vmatpush.bf16.msra.mxu0 %v817
        %835 = vmatpush.bf16.msra.mxu0 %v816
        %836 = vmatpush.bf16.msra.mxu0 %v815
        %837 = vmatpush.bf16.msra.mxu0 %v814
        %838 = vmatmul.bf16.gmra.mxu0 %v763
        %v839 = vpop.f32.mrf.mxu0
        %v840 = vadd.f32 %v781, %v839
        %v841 = vpop.f32.mrf.mxu0
        %842 = vdwg.mxu0
        %v843 = vlaneseq
        %v844 = vand.u32 %v843, 127
        %vm845 = vcmp.lt.s32.totalorder %v844, 16
        %846 = vadd.xlane.f32.xlu0 %v840
        %v847 = vpop.xlane.xlu0 %846
        %v848 = vmul.f32 %v847, 0.0625
        %v849 = vsub.f32 %v840, %v848
        %v850 = vsel %vm845, %v849, 0.0
        %v851 = vmul.f32 %v850, %v850
        %852 = vadd.xlane.f32.xlu0 %v851
        %v853 = vpop.xlane.xlu0 %852
        %v854 = vmul.f32 %v853, 0.0625
        %v855 = vadd.f32 %v854, 1e-05
        %v856 = vrsqrt.pop %v855
        %v857 = vmul.f32 %v856, %v855
        %v858 = vmul.f32 %v857, %v856
        %v859 = vmul.f32 0.5, %v858
        %v860 = vsub.f32 1.5, %v859
        %v861 = vmul.f32 %v856, %v860
        %vm862 = vweird.f32 %v855
        %vm863 = vweird.f32 %v856
        %vm864 = vmor %vm862, %vm863
        %v865 = vsel %vm864, %v856, %v861
        %v866 = vmul.f32 %v850, %v865
        %v867 = vld [vmem:[%s5 + $0x2] sm:$0x1]
        %v868 = vperm.slane %v867, 0
        %v869 = vmul.f32 %v866, %v868
        %v870 = vld [vmem:[%s5 + $0x3] sm:$0x1]
        %v871 = vperm.slane %v870, 0
        %v872 = vadd.f32 %v869, %v871
        %v873 = vsub.f32 0.0, %v872
        %v874 = vmul.f32 %v873, 1.442695
        %v875 = vpow.pop %v874
        %v876 = vadd.f32 %v875, 1.0
        %v877 = vrcp.pop %v876
        %v878 = vmul.f32 %v872, %v877
        %879 = vst [vmem:[%s259] sm:$0xff] %v878
        %s880 = sand.u32 %s164, 1
        %s881 = scalar_lea.sflag [#allocation3], %s880
        %s882 = sand.u32 %s164, 1
        %s883 = smul.addr %s882, 8
        %s884 = scalar_lea.vmem [#allocation2], %s883
        // Predicated region
        $region45: #{diffpool_layer_forward.1} parent=43 // pred_check
          %p885 = pneg %p174
        $region46: #{diffpool_layer_forward.1} parent=43 // pred_check_branch
          %887 = sbr.rel (%p885) target = $region48
        $region47: #{diffpool_layer_forward.1} parent=43 // pred_region
          %889 = vsyncadd %s881, 0
          %s890 = smul.addr %s20, 8
          %s891 = scalar_lea.hbm %s6, %s890
          %s893 = sshll.u32 %s884, 4
          %s894 = int_to_ptr.vmem [resolvable:$true] %s893
          %s895 = sshll.u32 %s891, 4
          %s896 = int_to_ptr.hbm [resolvable:$true] %s895
          %898 = dma.vmem_to_hbm [thread:$0]  %s894, 128, %s896, %s881
        $region48: #{diffpool_layer_forward.1} parent=43 // pred_fallthru
          _
      $region44: #{diffpool_layer_forward.1} parent=5 // pred_fallthru
        _
      %p899 = scmp.le.s32.totalorder 2, %s15
      // Predicated region
      $region49: #{diffpool_layer_forward.1} parent=5 // pred_check
        %p900 = pneg %p899
      $region50: #{diffpool_layer_forward.1} parent=5 // pred_check_branch
        %902 = sbr.rel (%p900) target = $region52
      $region51: #{diffpool_layer_forward.1} parent=5 // pred_region
        %s903 = ssub.s32 %s15, 2
        // Predicated region
        $region53: #{diffpool_layer_forward.1} parent=51 // pred_check
          %p904 = pneg %p180
        $region54: #{diffpool_layer_forward.1} parent=51 // pred_check_branch
          %906 = sbr.rel (%p904) target = $region56
        $region55: #{diffpool_layer_forward.1} parent=51 // pred_region
          %s907 = sand.u32 %s165, 1
          %s908 = scalar_lea.sflag [#allocation3], %s907
          %s909 = sand.u32 %s165, 1
          %s910 = smul.addr %s909, 8
          %s911 = scalar_lea.vmem [#allocation2], %s910
          %913 = dma.done %s908, 128
        $region56: #{diffpool_layer_forward.1} parent=51 // pred_fallthru
          _
      $region52: #{diffpool_layer_forward.1} parent=5 // pred_fallthru
        _
    $region6: #{diffpool_layer_forward.1} parent=1 // loop_footer
      %s19 = sadd.s32 1, %s15
    $region7: #{diffpool_layer_forward.1} parent=1 // loop_footer_branch
      %14 = sbr.rel target = $region3
    $region8: #{diffpool_layer_forward.1} parent=1 // loop_exit
      _
    %914 = vsyncpa [#allocation3], 1
    %s915 = scalar_lea.sflag [#allocation3], 1
    %916 = vsyncpa %s915, 1

</llo_original>
